<compile_context>
chip_gen: v7x
topology: tpu7x:2x2x1
jax: 0.10.0
libtpu: 0.0.40
codegen_flags: <defaults>
</compile_context>

<pallas_src>
import functools

import jax
import jax.numpy as jnp
from jax.experimental import pallas as pl
from jax.experimental.pallas import tpu as pltpu

LANE = 128      # lane width: hidden/output widths padded to a multiple of this
SUBLANE = 8     # sublane: row tiles / input width padded to a multiple of this


def _round_up(x, m):
    return (x + m - 1) // m * m


# ----------------------------------------------------------------------------
# Fused MLP kernel: all layers in one body, layer loop unrolled (static L).
# ----------------------------------------------------------------------------
def _mlp_fused_kernel(x_ref, w_ref, b_ref, o_ref, *, num_layers, in_p):
    # x_ref: (TM, IN_P)  w_ref: (L, D_PAD, D_PAD)  b_ref: (L, 1, D_PAD) f32
    # o_ref: (TM, D_PAD)
    compute_dtype = w_ref.dtype            # bf16 (prod) or f32 (strict mode)

    # Layer 0: contract only the real input rows of the padded weight block.
    # Static ref slices are free; avoids lane-padding x to 128 on the host.
    act = jnp.dot(
        x_ref[...].astype(compute_dtype),
        w_ref[0, 0:in_p, :],
        preferred_element_type=jnp.float32,
    )
    act = act + b_ref[0]                   # f32 bias add (VPU stays f32)

    for i in range(1, num_layers):         # static unroll
        act = jnp.maximum(act, 0.0)        # ReLU on all but the last layer
        act = jnp.dot(
            act.astype(compute_dtype),     # bf16 operands, f32 accumulation
            w_ref[i],
            preferred_element_type=jnp.float32,
        )
        act = act + b_ref[i]

    o_ref[...] = act.astype(o_ref.dtype)


# ----------------------------------------------------------------------------
# One-time parameter preparation (transpose + pad + stack) — off the hot path.
# ----------------------------------------------------------------------------
def prepare_mlp_params(params, *, dtype=jnp.bfloat16):
    """params: list of (w, b) with PyTorch layout w:(out,in), b:(out,).

    Weights are transposed to (in, out), zero-padded to a common lane-dense
    width D_PAD (multiple of 128) and stacked as (L, D_PAD, D_PAD); biases stay
    f32 as (L, 1, D_PAD).  Padded rows/cols/lanes are exactly 0, so padded
    lanes stay 0 through every bias/ReLU and the output is sliced afterwards.
    Default dtype bf16 feeds the MXU natively; pass jnp.float32 for bit-strict.
    """
    dims = [params[0][0].shape[1]] + [w.shape[0] for w, _ in params]
    d_pad = _round_up(max(dims), LANE)
    in_p = _round_up(dims[0], SUBLANE)
    num_layers = len(params)

    w_stack = jnp.zeros((num_layers, d_pad, d_pad), dtype)
    b_stack = jnp.zeros((num_layers, 1, d_pad), jnp.float32)
    for i, (w, b) in enumerate(params):
        n_out, n_in = w.shape
        w_stack = w_stack.at[i, :n_in, :n_out].set(jnp.transpose(w).astype(dtype))
        b_stack = b_stack.at[i, 0, :n_out].set(b.astype(jnp.float32))

    return {
        "w": w_stack,
        "b": b_stack,
        "input_dim": dims[0],
        "input_dim_padded": in_p,
        "output_dim": dims[-1],
        "num_layers": num_layers,
    }


# ----------------------------------------------------------------------------
# Row tiling: minimal tail padding, big tiles, >=2 steps for v7x megacore.
# ----------------------------------------------------------------------------
def _choose_row_tiling(m, *, tm_max=1024, megacore_split_rows=512):
    grid_n = max(1, -(-m // tm_max))                 # cdiv
    if grid_n == 1 and m >= megacore_split_rows:
        grid_n = 2                                   # let v7x's 2 TCs split rows
    tm = _round_up(max(1, -(-m // grid_n)), SUBLANE)
    return grid_n, tm, grid_n * tm


# ----------------------------------------------------------------------------
# Forward wrapper: flatten leading dims, pad rows only, single pallas_call.
# ----------------------------------------------------------------------------
def mlp_forward(prepared, x, *, tm_max=1024):
    w_stack, b_stack = prepared["w"], prepared["b"]
    input_dim = prepared["input_dim"]
    in_p = prepared["input_dim_padded"]
    output_dim = prepared["output_dim"]
    num_layers = prepared["num_layers"]
    d_pad = w_stack.shape[-1]

    lead_shape = x.shape[:-1]
    x2d = x.reshape(-1, input_dim)
    m = x2d.shape[0]
    grid_n, tm, m_pad = _choose_row_tiling(m, tm_max=tm_max)

    # Only pad rows (to the tile) and, if needed, lanes up to a sublane multiple.
    # No 128-lane pad of x — that would add a full HBM round-trip of the input.
    if m_pad != m or in_p != input_dim:
        x_p = jnp.zeros((m_pad, in_p), x2d.dtype).at[:m, :input_dim].set(x2d)
    else:
        x_p = x2d

    flops = int(2 * m_pad * d_pad * (in_p + (num_layers - 1) * d_pad))
    bytes_accessed = int(
        x_p.size * x_p.dtype.itemsize
        + w_stack.size * w_stack.dtype.itemsize
        + b_stack.size * b_stack.dtype.itemsize
        + m_pad * d_pad * x2d.dtype.itemsize
    )

    kernel = functools.partial(_mlp_fused_kernel, num_layers=num_layers, in_p=in_p)
    out_p = pl.pallas_call(
        kernel,
        out_shape=jax.ShapeDtypeStruct((m_pad, d_pad), x2d.dtype),
        grid_spec=pltpu.PrefetchScalarGridSpec(
            num_scalar_prefetch=0,
            grid=(grid_n,),
            in_specs=[
                # x: tiled over rows, full (narrow) last dim — legal block shape.
                pl.BlockSpec((tm, in_p), lambda i: (i, 0)),
                # weights / biases: constant block index -> resident in VMEM.
                pl.BlockSpec(w_stack.shape, lambda i: (0, 0, 0)),
                pl.BlockSpec(b_stack.shape, lambda i: (0, 0, 0)),
            ],
            out_specs=pl.BlockSpec((tm, d_pad), lambda i: (i, 0)),
        ),
        compiler_params=pltpu.CompilerParams(
            dimension_semantics=("parallel",),   # v7x: shard rows over 2 TCs
        ),
        cost_estimate=pl.CostEstimate(
            flops=flops, transcendentals=0, bytes_accessed=bytes_accessed
        ),
    )(x_p, w_stack, b_stack)

    return out_p[:m, :output_dim].reshape(*lead_shape, output_dim)


# ----------------------------------------------------------------------------
# Init matching nn.Linear defaults (uniform +/- 1/sqrt(fan_in)), PyTorch layout.
# ----------------------------------------------------------------------------
def init_mlp_params(key, input_dim, hidden_dim, output_dim, num_layers):
    h = [hidden_dim] * (num_layers - 1)
    dims_in = [input_dim] + h
    dims_out = h + [output_dim]
    params = []
    for n_in, n_out in zip(dims_in, dims_out):
        key, kw, kb = jax.random.split(key, 3)
        bound = 1.0 / jnp.sqrt(jnp.float32(n_in))
        w = jax.random.uniform(kw, (n_out, n_in), jnp.float32, -bound, bound)
        b = jax.random.uniform(kb, (n_out,), jnp.float32, -bound, bound)
        params.append((w, b))
    return params


def mlp_reference(params, x):
    """Pure-f32 JAX reference with PyTorch semantics."""
    num_layers = len(params)
    for i, (w, b) in enumerate(params):
        x = x @ w.T + b
        if i < num_layers - 1:
            x = jnp.maximum(x, 0.0)
    return x


def mlp_reference_mixed(params, x, compute_dtype):
    """Reference mimicking the kernel's precision: operands in compute_dtype,
    f32 accumulation, f32 bias/ReLU (for tight checking of the bf16 path)."""
    act = x.astype(jnp.float32)
    num_layers = len(params)
    for i, (w, b) in enumerate(params):
        act = jnp.dot(
            act.astype(compute_dtype),
            jnp.transpose(w).astype(compute_dtype),
            preferred_element_type=jnp.float32,
        ) + b.astype(jnp.float32)
        if i < num_layers - 1:
            act = jnp.maximum(act, 0.0)
    return act


if __name__ == "__main__":
    key = jax.random.PRNGKey(0)

    # Small shapes consistent with the module: (batch=2, seq=8, input_dim=16).
    input_dim, hidden_dim, output_dim, num_layers = 16, 32, 4, 3
    k_params, k_x = jax.random.split(key)
    params = init_mlp_params(k_params, input_dim, hidden_dim, output_dim, num_layers)
    x = jax.random.normal(k_x, (2, 8, input_dim), jnp.float32)

    # 1) Strict-f32 path: exact-semantics check against the PyTorch reference.
    prep_f32 = prepare_mlp_params(params, dtype=jnp.float32)
    out_f32 = jax.block_until_ready(mlp_forward(prep_f32, x))
    ref_f32 = mlp_reference(params, x)
    assert out_f32.shape == (2, 8, output_dim), out_f32.shape
    assert jnp.allclose(out_f32, ref_f32, atol=1e-5, rtol=1e-5), "f32 mismatch vs reference"

    # 2) Production path: bf16 MXU operands, f32 accumulation (per perf review).
    prep_bf16 = prepare_mlp_params(params)            # dtype=jnp.bfloat16 (default)
    out_bf16 = jax.block_until_ready(mlp_forward(prep_bf16, x))
    ref_mixed = mlp_reference_mixed(params, x, jnp.bfloat16)
    assert out_bf16.shape == (2, 8, output_dim), out_bf16.shape
    assert jnp.allclose(out_bf16, ref_mixed, atol=2e-4, rtol=2e-4), "bf16 mismatch vs mixed ref"
    assert jnp.allclose(out_bf16, ref_f32, atol=1e-1, rtol=5e-2), "bf16 sanity vs f32 ref"

    print("KERNEL_OK")
</pallas_src>

<mosaic_0001>
module attributes {stable_mosaic.version = 11 : i64} {
  func.func @_mlp_fused_kernel(%arg0: i32, %arg1: memref<16x16xf32, #tpu.memory_space<vmem>>, %arg2: memref<3x128x128xf32, #tpu.memory_space<vmem>>, %arg3: memref<3x1x128xf32, #tpu.memory_space<vmem>>, %arg4: memref<16x128xf32, #tpu.memory_space<vmem>>) attributes {dimension_semantics = [#tpu.dimension_semantics<parallel>], iteration_bounds = array<i64: 1>, scalar_prefetch = 0 : i64, scratch_operands = 0 : i64, tpu.core_type = #tpu.core_type<tc>, window_params = [{transform_indices = @transform_0, window_bounds = array<i64: 16, 16>}, {pipeline_mode = #tpu.pipeline_mode<synchronous>, transform_indices = @transform_1, window_bounds = array<i64: 3, 128, 128>}, {pipeline_mode = #tpu.pipeline_mode<synchronous>, transform_indices = @transform_2, window_bounds = array<i64: 3, 1, 128>}, {transform_indices = @transform_3, window_bounds = array<i64: 16, 128>}]} {
    %c0 = arith.constant 0 : index
    %c0_0 = arith.constant 0 : index
    %0 = vector.load %arg1[%c0, %c0_0] : memref<16x16xf32, #tpu.memory_space<vmem>>, vector<16x16xf32>
    %c0_1 = arith.constant 0 : index
    %c0_2 = arith.constant 0 : index
    %c0_3 = arith.constant 0 : index
    %1 = vector.load %arg2[%c0_1, %c0_2, %c0_3] : memref<3x128x128xf32, #tpu.memory_space<vmem>>, vector<1x16x128xf32>
    %2 = vector.shape_cast %1 : vector<1x16x128xf32> to vector<16x128xf32>
    %cst = arith.constant dense<0.000000e+00> : vector<16x128xf32>
    %3 = tpu.matmul %0, %2, %cst {dimension_numbers = #tpu.dot_dimension_numbers<[1], [0], [0], [1], [0, 0, 1, 1], [], []>} : vector<16x16xf32>, vector<16x128xf32>, vector<16x128xf32> -> vector<16x128xf32>
    %c0_4 = arith.constant 0 : index
    %c0_5 = arith.constant 0 : index
    %c0_6 = arith.constant 0 : index
    %4 = vector.load %arg3[%c0_4, %c0_5, %c0_6] : memref<3x1x128xf32, #tpu.memory_space<vmem>>, vector<1x1x128xf32>
    %5 = vector.shape_cast %4 : vector<1x1x128xf32> to vector<1x128xf32>
    %6 = vector.broadcast %5 : vector<1x128xf32> to vector<16x128xf32>
    %7 = arith.addf %3, %6 : vector<16x128xf32>
    %cst_7 = arith.constant 0.000000e+00 : f32
    %8 = vector.broadcast %cst_7 : f32 to vector<16x128xf32>
    %9 = arith.maximumf %7, %8 : vector<16x128xf32>
    %c1 = arith.constant 1 : index
    %c0_8 = arith.constant 0 : index
    %c0_9 = arith.constant 0 : index
    %10 = vector.load %arg2[%c1, %c0_8, %c0_9] : memref<3x128x128xf32, #tpu.memory_space<vmem>>, vector<1x128x128xf32>
    %11 = vector.shape_cast %10 : vector<1x128x128xf32> to vector<128x128xf32>
    %cst_10 = arith.constant dense<0.000000e+00> : vector<16x128xf32>
    %12 = tpu.matmul %9, %11, %cst_10 {dimension_numbers = #tpu.dot_dimension_numbers<[1], [0], [0], [1], [0, 0, 1, 1], [], []>} : vector<16x128xf32>, vector<128x128xf32>, vector<16x128xf32> -> vector<16x128xf32>
    %c1_11 = arith.constant 1 : index
    %c0_12 = arith.constant 0 : index
    %c0_13 = arith.constant 0 : index
    %13 = vector.load %arg3[%c1_11, %c0_12, %c0_13] : memref<3x1x128xf32, #tpu.memory_space<vmem>>, vector<1x1x128xf32>
    %14 = vector.shape_cast %13 : vector<1x1x128xf32> to vector<1x128xf32>
    %15 = vector.broadcast %14 : vector<1x128xf32> to vector<16x128xf32>
    %16 = arith.addf %12, %15 : vector<16x128xf32>
    %cst_14 = arith.constant 0.000000e+00 : f32
    %17 = vector.broadcast %cst_14 : f32 to vector<16x128xf32>
    %18 = arith.maximumf %16, %17 : vector<16x128xf32>
    %c2 = arith.constant 2 : index
    %c0_15 = arith.constant 0 : index
    %c0_16 = arith.constant 0 : index
    %19 = vector.load %arg2[%c2, %c0_15, %c0_16] : memref<3x128x128xf32, #tpu.memory_space<vmem>>, vector<1x128x128xf32>
    %20 = vector.shape_cast %19 : vector<1x128x128xf32> to vector<128x128xf32>
    %cst_17 = arith.constant dense<0.000000e+00> : vector<16x128xf32>
    %21 = tpu.matmul %18, %20, %cst_17 {dimension_numbers = #tpu.dot_dimension_numbers<[1], [0], [0], [1], [0, 0, 1, 1], [], []>} : vector<16x128xf32>, vector<128x128xf32>, vector<16x128xf32> -> vector<16x128xf32>
    %c2_18 = arith.constant 2 : index
    %c0_19 = arith.constant 0 : index
    %c0_20 = arith.constant 0 : index
    %22 = vector.load %arg3[%c2_18, %c0_19, %c0_20] : memref<3x1x128xf32, #tpu.memory_space<vmem>>, vector<1x1x128xf32>
    %23 = vector.shape_cast %22 : vector<1x1x128xf32> to vector<1x128xf32>
    %24 = vector.broadcast %23 : vector<1x128xf32> to vector<16x128xf32>
    %25 = arith.addf %21, %24 : vector<16x128xf32>
    %c0_21 = arith.constant 0 : index
    %c0_22 = arith.constant 0 : index
    %26 = vector.load %arg4[%c0_21, %c0_22] : memref<16x128xf32, #tpu.memory_space<vmem>>, vector<16x128xf32>
    tpu.vector_store %arg4[%c0_21, %c0_22], %25 {strides = array<i32>} : memref<16x128xf32, #tpu.memory_space<vmem>>, vector<16x128xf32>,
    return
  }
  func.func @transform_0(%arg0: i32) -> (i32, i32) {
    %c0_i32 = arith.constant 0 : i32
    %c0_i32_0 = arith.constant 0 : i32
    return %arg0, %c0_i32 : i32, i32
  }
  func.func @transform_1(%arg0: i32) -> (i32, i32, i32) {
    %c0_i32 = arith.constant 0 : i32
    %c0_i32_0 = arith.constant 0 : i32
    %c0_i32_1 = arith.constant 0 : i32
    %c0_i32_2 = arith.constant 0 : i32
    return %c0_i32, %c0_i32_0, %c0_i32_1 : i32, i32, i32
  }
  func.func @transform_2(%arg0: i32) -> (i32, i32, i32) {
    %c0_i32 = arith.constant 0 : i32
    %c0_i32_0 = arith.constant 0 : i32
    %c0_i32_1 = arith.constant 0 : i32
    %c0_i32_2 = arith.constant 0 : i32
    return %c0_i32, %c0_i32_0, %c0_i32_1 : i32, i32, i32
  }
  func.func @transform_3(%arg0: i32) -> (i32, i32) {
    %c0_i32 = arith.constant 0 : i32
    %c0_i32_0 = arith.constant 0 : i32
    return %arg0, %c0_i32 : i32, i32
  }
}

</mosaic_0001>

<llo_original>
// kernel: tpu_custom_call.1
$region0: #{tpu_custom_call.1}
  #allocation0 [shape = 'u32[]', space=smem, size = 0x4, offset = 0x4, fixed_abs, tag = 'smem constant byte address 0x4 - core index']
  #allocation1 [shape = 'u32[144,128]{1,0:T(1,128)}', space=vmem, size = 0x12000, scoped, tag = 'internal scratch']
  %s0 = inlined_call_operand.hbm [shape: f32[16,16], index: 0, kind: input, shape index: {}]
  %s1 = inlined_call_operand.hbm [shape: f32[3,128,128], index: 1, kind: input, shape index: {}]
  %s2 = inlined_call_operand.vmem [shape: f32[3,1,128], index: 2, kind: input, shape index: {}]
  %s3 = inlined_call_operand.hbm [shape: f32[16,128], index: 3, kind: output, shape index: {}]
  %s4 = sld [smem:[#allocation0]]
  $region30: #{tpu_custom_call.1} parent=0
    _
  %s6 = ssub.s32 1, %s4
  %s7 = scalar_select 0, %s6, %s4
  $region1: #{tpu_custom_call.1} parent=0
    #allocation2 [shape = 'u8[8192]{0}', space=vmem, size = 0x2000, scoped, tag = 'input window, operand 0, single buffered']
    #allocation3 [shape = 's32[1]{0}', space=sflag, size = 0x4, scoped, tag = 'scoped memory for tpu_custom_call.1']
    #allocation4 [shape = 's32[1]{0}', space=sflag, size = 0x4, scoped, tag = 'scoped memory for tpu_custom_call.1']
    #allocation5 [shape = 'u8[196608]{0}', space=vmem, size = 0x30000, scoped, tag = 'input window, operand 1, single buffered']
    #allocation6 [shape = 's32[1]{0}', space=sflag, size = 0x4, scoped, tag = 'scoped memory for tpu_custom_call.1']
    #allocation7 [shape = 'u8[8192]{0}', space=vmem, size = 0x2000, scoped, tag = 'output window, operand 0, single buffered']
    %8 = vsyncpa [#allocation3], 0
    %9 = vsyncpa [#allocation6], 0
    %10 = vsyncpa [#allocation4], 0
    // Predicated region
    $region2: #{tpu_custom_call.1} parent=1 // pred_check
      _
    $region3: #{tpu_custom_call.1} parent=1 // pred_check_branch
      %12 = sbr.rel (0) target = $region5
    $region4: #{tpu_custom_call.1} parent=1 // pred_region
      %s14 = ssub.s32 256, 256
      %15 = vsyncadd [#allocation3], %s14
      %s16 = sshll.u32 [#allocation2], 4
      %s17 = int_to_ptr.vmem [resolvable:$true] %s16
      %22 = dma.hbm_to_vmem [thread:$0]  %s0, 256, %s17, [#allocation3], 128, 128, 8
    $region5: #{tpu_custom_call.1} parent=1 // pred_fallthru
      _
    // Predicated region
    $region6: #{tpu_custom_call.1} parent=1 // pred_check
      _
    $region7: #{tpu_custom_call.1} parent=1 // pred_check_branch
      %24 = sbr.rel (0) target = $region9
    $region8: #{tpu_custom_call.1} parent=1 // pred_region
      %s26 = ssub.s32 6144, 6144
      %27 = vsyncadd [#allocation6], %s26
      %s28 = sshll.u32 [#allocation5], 4
      %s29 = int_to_ptr.vmem [resolvable:$true] %s28
      %34 = dma.hbm_to_vmem [thread:$0]  %s1, 6144, %s29, [#allocation6], 128, 128, 8
    $region9: #{tpu_custom_call.1} parent=1 // pred_fallthru
      _
    // Predicated region
    $region10: #{tpu_custom_call.1} parent=1 // pred_check
      _
    $region11: #{tpu_custom_call.1} parent=1 // pred_check_branch
      %36 = sbr.rel (0) target = $region13
    $region12: #{tpu_custom_call.1} parent=1 // pred_region
      _
    $region13: #{tpu_custom_call.1} parent=1 // pred_fallthru
      _
    // Predicated region
    $region14: #{tpu_custom_call.1} parent=1 // pred_check
      _
    $region15: #{tpu_custom_call.1} parent=1 // pred_check_branch
      %38 = sbr.rel (0) target = $region17
    $region16: #{tpu_custom_call.1} parent=1 // pred_region
      %39 = dma.done [#allocation3], 256
    $region17: #{tpu_custom_call.1} parent=1 // pred_fallthru
      _
    // Predicated region
    $region18: #{tpu_custom_call.1} parent=1 // pred_check
      _
    $region19: #{tpu_custom_call.1} parent=1 // pred_check_branch
      %41 = sbr.rel (0) target = $region21
    $region20: #{tpu_custom_call.1} parent=1 // pred_region
      %42 = dma.done [#allocation6], 6144
    $region21: #{tpu_custom_call.1} parent=1 // pred_fallthru
      _
    %v43 = vld [vmem:[#allocation2] sm:$0xff]
    %v44 = vld [vmem:[#allocation2 + $0x8] sm:$0xff]
    %v45 = vld [vmem:[#allocation5] sm:$0xff]
    %v46 = vld [vmem:[#allocation5 + $0x8] sm:$0xff]
    %v47 = vld [vmem:[%s2] sm:$0x1]
    %v49 = vlaneseq
    %v50 = vshrl.u32 %v49, 7
    %v51 = vsub.s32 0, %v50
    %v52 = vrot.slane %v47, %v51
    %vm54 = vcmask 130048
    %v56 = vsel %vm54, %v43, 0
    %v59 = vsel %vm54, %v44, 0
    %61 = vmatprep.subr.mxu0 0.0
    %62 = vmatpush1.msra.mxu0 %v45
    %63 = vmatprep.subr.mxu0 0.0
    %64 = vmatpush1.msra.mxu0 %v46
    %65 = vmatprep.subr.mxu0 0.0
    %66 = vmatpush1.msra.mxu0 0.0
    %67 = vmatprep.subr.mxu0 0.0
    %68 = vmatpush1.msra.mxu0 0.0
    %69 = vmatprep.subr.mxu0 0.0
    %70 = vmatpush1.msra.mxu0 0.0
    %71 = vmatprep.subr.mxu0 0.0
    %72 = vmatpush1.msra.mxu0 0.0
    %73 = vmatprep.subr.mxu0 0.0
    %74 = vmatpush1.msra.mxu0 0.0
    %75 = vmatprep.subr.mxu0 0.0
    %76 = vmatpush1.msra.mxu0 0.0
    %77 = vmatprep.subr.mxu0 0.0
    %78 = vmatpush1.msra.mxu0 0.0
    %79 = vmatprep.subr.mxu0 0.0
    %80 = vmatpush1.msra.mxu0 0.0
    %81 = vmatprep.subr.mxu0 0.0
    %82 = vmatpush1.msra.mxu0 0.0
    %83 = vmatprep.subr.mxu0 0.0
    %84 = vmatpush1.msra.mxu0 0.0
    %85 = vmatprep.subr.mxu0 0.0
    %86 = vmatpush1.msra.mxu0 0.0
    %87 = vmatprep.subr.mxu0 0.0
    %88 = vmatpush1.msra.mxu0 0.0
    %89 = vmatprep.subr.mxu0 0.0
    %90 = vmatpush1.msra.mxu0 0.0
    %91 = vmatprep.subr.mxu0 0.0
    %92 = vmatpush1.msra.mxu0 0.0
    %93 = vmatprep.subr.mxu0 0.0
    %94 = vmatpush1.msra.mxu0 0.0
    %95 = vmatprep.subr.mxu0 0.0
    %96 = vmatpush1.msra.mxu0 0.0
    %97 = vmatprep.subr.mxu0 0.0
    %98 = vmatpush1.msra.mxu0 0.0
    %99 = vmatprep.subr.mxu0 0.0
    %100 = vmatpush1.msra.mxu0 0.0
    %101 = vmatprep.subr.mxu0 0.0
    %102 = vmatpush1.msra.mxu0 0.0
    %103 = vmatprep.subr.mxu0 0.0
    %104 = vmatpush1.msra.mxu0 0.0
    %105 = vmatprep.subr.mxu0 0.0
    %106 = vmatpush1.msra.mxu0 0.0
    %107 = vmatprep.subr.mxu0 0.0
    %108 = vmatpush1.msra.mxu0 0.0
    %109 = vmatprep.subr.mxu0 0.0
    %110 = vmatpush1.msra.mxu0 0.0
    %111 = vmatprep.subr.mxu0 0.0
    %112 = vmatpush1.msra.mxu0 0.0
    %113 = vmatprep.subr.mxu0 0.0
    %114 = vmatpush1.msra.mxu0 0.0
    %115 = vmatprep.subr.mxu0 0.0
    %116 = vmatpush1.msra.mxu0 0.0
    %117 = vmatprep.subr.mxu0 0.0
    %118 = vmatpush1.msra.mxu0 0.0
    %119 = vmatprep.subr.mxu0 0.0
    %120 = vmatpush1.msra.mxu0 0.0
    %121 = vmatprep.subr.mxu0 0.0
    %122 = vmatpush1.msra.mxu0 0.0
    %123 = vmatprep.subr.mxu0 0.0
    %124 = vmatpush1.msra.mxu0 0.0
    %125 = vmatprep.mubr.f32.mxu0 0.0
    %126 = vmatmul.mubr.f32.gmra.mrb[0].mxu0 %v56
    %v127 = vpop.f32.mrb[0].mxu0
    %v128 = vadd.f32 %v52, %v127
    %v129 = vpop.f32.mrb[0].mxu0
    %130 = vmatprep.mubr.f32.mxu0 0.0
    %131 = vmatmul.mubr.f32.gmra.mrb[0].mxu0 %v59
    %v132 = vpop.f32.mrb[0].mxu0
    %v133 = vadd.f32 %v52, %v132
    %v134 = vpop.f32.mrb[0].mxu0
    %135 = vdwg.mxu0
    %v136 = vmax.f32 %v128, 0.0
    %v137 = vmax.f32 %v133, 0.0
    %s138 = scalar_lea.vmem [#allocation5], 128
    %v139 = vld [vmem:[%s138] sm:$0xff]
    %v140 = vld [vmem:[%s138 + $0x8] sm:$0xff]
    %v141 = vld [vmem:[%s138 + $0x10] sm:$0xff]
    %v142 = vld [vmem:[%s138 + $0x18] sm:$0xff]
    %v143 = vld [vmem:[%s138 + $0x20] sm:$0xff]
    %v144 = vld [vmem:[%s138 + $0x28] sm:$0xff]
    %v145 = vld [vmem:[%s138 + $0x30] sm:$0xff]
    %v146 = vld [vmem:[%s138 + $0x38] sm:$0xff]
    %v147 = vld [vmem:[%s138 + $0x40] sm:$0xff]
    %v148 = vld [vmem:[%s138 + $0x48] sm:$0xff]
    %v149 = vld [vmem:[%s138 + $0x50] sm:$0xff]
    %v150 = vld [vmem:[%s138 + $0x58] sm:$0xff]
    %v151 = vld [vmem:[%s138 + $0x60] sm:$0xff]
    %v152 = vld [vmem:[%s138 + $0x68] sm:$0xff]
    %v153 = vld [vmem:[%s138 + $0x70] sm:$0xff]
    %v154 = vld [vmem:[%s138 + $0x78] sm:$0xff]
    %s155 = scalar_lea.vmem %s2, 1
    %v156 = vld [vmem:[%s155] sm:$0x1]
    %v158 = vlaneseq
    %v159 = vshrl.u32 %v158, 7
    %v160 = vsub.s32 0, %v159
    %v161 = vrot.slane %v156, %v160
    %163 = vmatprep.subr.mxu0 0.0
    %164 = vmatpush1.msra.mxu0 %v139
    %165 = vmatprep.subr.mxu0 0.0
    %166 = vmatpush1.msra.mxu0 %v140
    %167 = vmatprep.subr.mxu0 0.0
    %168 = vmatpush1.msra.mxu0 %v141
    %169 = vmatprep.subr.mxu0 0.0
    %170 = vmatpush1.msra.mxu0 %v142
    %171 = vmatprep.subr.mxu0 0.0
    %172 = vmatpush1.msra.mxu0 %v143
    %173 = vmatprep.subr.mxu0 0.0
    %174 = vmatpush1.msra.mxu0 %v144
    %175 = vmatprep.subr.mxu0 0.0
    %176 = vmatpush1.msra.mxu0 %v145
    %177 = vmatprep.subr.mxu0 0.0
    %178 = vmatpush1.msra.mxu0 %v146
    %179 = vmatprep.subr.mxu0 0.0
    %180 = vmatpush1.msra.mxu0 %v147
    %181 = vmatprep.subr.mxu0 0.0
    %182 = vmatpush1.msra.mxu0 %v148
    %183 = vmatprep.subr.mxu0 0.0
    %184 = vmatpush1.msra.mxu0 %v149
    %185 = vmatprep.subr.mxu0 0.0
    %186 = vmatpush1.msra.mxu0 %v150
    %187 = vmatprep.subr.mxu0 0.0
    %188 = vmatpush1.msra.mxu0 %v151
    %189 = vmatprep.subr.mxu0 0.0
    %190 = vmatpush1.msra.mxu0 %v152
    %191 = vmatprep.subr.mxu0 0.0
    %192 = vmatpush1.msra.mxu0 %v153
    %193 = vmatprep.subr.mxu0 0.0
    %194 = vmatpush1.msra.mxu0 %v154
    %195 = vmatprep.subr.mxu0 0.0
    %196 = vmatpush1.msra.mxu0 0.0
    %197 = vmatprep.subr.mxu0 0.0
    %198 = vmatpush1.msra.mxu0 0.0
    %199 = vmatprep.subr.mxu0 0.0
    %200 = vmatpush1.msra.mxu0 0.0
    %201 = vmatprep.subr.mxu0 0.0
    %202 = vmatpush1.msra.mxu0 0.0
    %203 = vmatprep.subr.mxu0 0.0
    %204 = vmatpush1.msra.mxu0 0.0
    %205 = vmatprep.subr.mxu0 0.0
    %206 = vmatpush1.msra.mxu0 0.0
    %207 = vmatprep.subr.mxu0 0.0
    %208 = vmatpush1.msra.mxu0 0.0
    %209 = vmatprep.subr.mxu0 0.0
    %210 = vmatpush1.msra.mxu0 0.0
    %211 = vmatprep.subr.mxu0 0.0
    %212 = vmatpush1.msra.mxu0 0.0
    %213 = vmatprep.subr.mxu0 0.0
    %214 = vmatpush1.msra.mxu0 0.0
    %215 = vmatprep.subr.mxu0 0.0
    %216 = vmatpush1.msra.mxu0 0.0
    %217 = vmatprep.subr.mxu0 0.0
    %218 = vmatpush1.msra.mxu0 0.0
    %219 = vmatprep.subr.mxu0 0.0
    %220 = vmatpush1.msra.mxu0 0.0
    %221 = vmatprep.subr.mxu0 0.0
    %222 = vmatpush1.msra.mxu0 0.0
    %223 = vmatprep.subr.mxu0 0.0
    %224 = vmatpush1.msra.mxu0 0.0
    %225 = vmatprep.subr.mxu0 0.0
    %226 = vmatpush1.msra.mxu0 0.0
    %227 = vmatprep.mubr.f32.mxu0 0.0
    %228 = vmatmul.mubr.f32.gmra.mrb[0].mxu0 %v136
    %v229 = vpop.f32.mrb[0].mxu0
    %v230 = vadd.f32 %v161, %v229
    %v231 = vpop.f32.mrb[0].mxu0
    %232 = vmatprep.mubr.f32.mxu0 0.0
    %233 = vmatmul.mubr.f32.gmra.mrb[0].mxu0 %v137
    %v234 = vpop.f32.mrb[0].mxu0
    %v235 = vadd.f32 %v161, %v234
    %v236 = vpop.f32.mrb[0].mxu0
    %237 = vdwg.mxu0
    %v238 = vmax.f32 %v230, 0.0
    %v239 = vmax.f32 %v235, 0.0
    %s240 = scalar_lea.vmem [#allocation5], 256
    %v241 = vld [vmem:[%s240] sm:$0xff]
    %v242 = vld [vmem:[%s240 + $0x8] sm:$0xff]
    %v243 = vld [vmem:[%s240 + $0x10] sm:$0xff]
    %v244 = vld [vmem:[%s240 + $0x18] sm:$0xff]
    %v245 = vld [vmem:[%s240 + $0x20] sm:$0xff]
    %v246 = vld [vmem:[%s240 + $0x28] sm:$0xff]
    %v247 = vld [vmem:[%s240 + $0x30] sm:$0xff]
    %v248 = vld [vmem:[%s240 + $0x38] sm:$0xff]
    %v249 = vld [vmem:[%s240 + $0x40] sm:$0xff]
    %v250 = vld [vmem:[%s240 + $0x48] sm:$0xff]
    %v251 = vld [vmem:[%s240 + $0x50] sm:$0xff]
    %v252 = vld [vmem:[%s240 + $0x58] sm:$0xff]
    %v253 = vld [vmem:[%s240 + $0x60] sm:$0xff]
    %v254 = vld [vmem:[%s240 + $0x68] sm:$0xff]
    %v255 = vld [vmem:[%s240 + $0x70] sm:$0xff]
    %v256 = vld [vmem:[%s240 + $0x78] sm:$0xff]
    %s257 = scalar_lea.vmem %s2, 2
    %v258 = vld [vmem:[%s257] sm:$0x1]
    %v260 = vlaneseq
    %v261 = vshrl.u32 %v260, 7
    %v262 = vsub.s32 0, %v261
    %v263 = vrot.slane %v258, %v262
    %265 = vmatprep.subr.mxu0 0.0
    %266 = vmatpush1.msra.mxu0 %v241
    %267 = vmatprep.subr.mxu0 0.0
    %268 = vmatpush1.msra.mxu0 %v242
    %269 = vmatprep.subr.mxu0 0.0
    %270 = vmatpush1.msra.mxu0 %v243
    %271 = vmatprep.subr.mxu0 0.0
    %272 = vmatpush1.msra.mxu0 %v244
    %273 = vmatprep.subr.mxu0 0.0
    %274 = vmatpush1.msra.mxu0 %v245
    %275 = vmatprep.subr.mxu0 0.0
    %276 = vmatpush1.msra.mxu0 %v246
    %277 = vmatprep.subr.mxu0 0.0
    %278 = vmatpush1.msra.mxu0 %v247
    %279 = vmatprep.subr.mxu0 0.0
    %280 = vmatpush1.msra.mxu0 %v248
    %281 = vmatprep.subr.mxu0 0.0
    %282 = vmatpush1.msra.mxu0 %v249
    %283 = vmatprep.subr.mxu0 0.0
    %284 = vmatpush1.msra.mxu0 %v250
    %285 = vmatprep.subr.mxu0 0.0
    %286 = vmatpush1.msra.mxu0 %v251
    %287 = vmatprep.subr.mxu0 0.0
    %288 = vmatpush1.msra.mxu0 %v252
    %289 = vmatprep.subr.mxu0 0.0
    %290 = vmatpush1.msra.mxu0 %v253
    %291 = vmatprep.subr.mxu0 0.0
    %292 = vmatpush1.msra.mxu0 %v254
    %293 = vmatprep.subr.mxu0 0.0
    %294 = vmatpush1.msra.mxu0 %v255
    %295 = vmatprep.subr.mxu0 0.0
    %296 = vmatpush1.msra.mxu0 %v256
    %297 = vmatprep.subr.mxu0 0.0
    %298 = vmatpush1.msra.mxu0 0.0
    %299 = vmatprep.subr.mxu0 0.0
    %300 = vmatpush1.msra.mxu0 0.0
    %301 = vmatprep.subr.mxu0 0.0
    %302 = vmatpush1.msra.mxu0 0.0
    %303 = vmatprep.subr.mxu0 0.0
    %304 = vmatpush1.msra.mxu0 0.0
    %305 = vmatprep.subr.mxu0 0.0
    %306 = vmatpush1.msra.mxu0 0.0
    %307 = vmatprep.subr.mxu0 0.0
    %308 = vmatpush1.msra.mxu0 0.0
    %309 = vmatprep.subr.mxu0 0.0
    %310 = vmatpush1.msra.mxu0 0.0
    %311 = vmatprep.subr.mxu0 0.0
    %312 = vmatpush1.msra.mxu0 0.0
    %313 = vmatprep.subr.mxu0 0.0
    %314 = vmatpush1.msra.mxu0 0.0
    %315 = vmatprep.subr.mxu0 0.0
    %316 = vmatpush1.msra.mxu0 0.0
    %317 = vmatprep.subr.mxu0 0.0
    %318 = vmatpush1.msra.mxu0 0.0
    %319 = vmatprep.subr.mxu0 0.0
    %320 = vmatpush1.msra.mxu0 0.0
    %321 = vmatprep.subr.mxu0 0.0
    %322 = vmatpush1.msra.mxu0 0.0
    %323 = vmatprep.subr.mxu0 0.0
    %324 = vmatpush1.msra.mxu0 0.0
    %325 = vmatprep.subr.mxu0 0.0
    %326 = vmatpush1.msra.mxu0 0.0
    %327 = vmatprep.subr.mxu0 0.0
    %328 = vmatpush1.msra.mxu0 0.0
    %329 = vmatprep.mubr.f32.mxu0 0.0
    %330 = vmatmul.mubr.f32.gmra.mrb[0].mxu0 %v238
    %v331 = vpop.f32.mrb[0].mxu0
    %v332 = vadd.f32 %v263, %v331
    %v333 = vpop.f32.mrb[0].mxu0
    %334 = vmatprep.mubr.f32.mxu0 0.0
    %335 = vmatmul.mubr.f32.gmra.mrb[0].mxu0 %v239
    %v336 = vpop.f32.mrb[0].mxu0
    %v337 = vadd.f32 %v263, %v336
    %v338 = vpop.f32.mrb[0].mxu0
    %339 = vdwg.mxu0
    %340 = vst [vmem:[#allocation7] sm:$0xff] %v332
    %341 = vst [vmem:[#allocation7 + $0x8] sm:$0xff] %v337
    // Predicated region
    $region22: #{tpu_custom_call.1} parent=1 // pred_check
      _
    $region23: #{tpu_custom_call.1} parent=1 // pred_check_branch
      %343 = sbr.rel (0) target = $region25
    $region24: #{tpu_custom_call.1} parent=1 // pred_region
      %s345 = ssub.s32 256, 256
      %346 = vsyncadd [#allocation4], %s345
      %s347 = sshll.u32 [#allocation7], 4
      %s348 = int_to_ptr.vmem [resolvable:$true] %s347
      %353 = dma.vmem_to_hbm [thread:$0]  %s348, 256, %s3, [#allocation4], 128, 128, 8
    $region25: #{tpu_custom_call.1} parent=1 // pred_fallthru
      _
    // Predicated region
    $region26: #{tpu_custom_call.1} parent=1 // pred_check
      _
    $region27: #{tpu_custom_call.1} parent=1 // pred_check_branch
      %355 = sbr.rel (0) target = $region29
    $region28: #{tpu_custom_call.1} parent=1 // pred_region
      %356 = dma.done [#allocation4], 256
    $region29: #{tpu_custom_call.1} parent=1 // pred_fallthru
      _
    %357 = vsyncpa [#allocation3], 1
    %358 = vsyncpa [#allocation6], 1
    %359 = vsyncpa [#allocation4], 1

</llo_original>
